<compile_context>
chip_gen: v5e
topology: v5e:2x2
jax: 0.10.0
libtpu: 0.0.40
codegen_flags: <defaults>
</compile_context>

<pallas_src>
import functools

import jax
import jax.numpy as jnp
from jax.experimental import pallas as pl
from jax.experimental.pallas import tpu as pltpu


def _cdiv(a, b):
    return -(-a // b)


def _round_up(a, b):
    return _cdiv(a, b) * b


def _vmem_capacity_bytes():
    """Physical VMEM capacity; conservative (v7x-sized) fallback if unavailable."""
    try:
        info = pltpu.get_tpu_info()
        cap = getattr(info, "vmem_capacity_bytes", None)
        if cap:
            return int(cap)
    except Exception:
        pass
    return 64 * 1024 * 1024


def _custom_ln_kernel(x_ref, p_ref, o_ref, *, seg, eps, prescale):
    """One tile of (packed) rows.

    x_ref: (T, C) with C = seg * emb_dim; each lane-row holds `seg` independent
           logical rows of length emb_dim packed along the 128-lane axis.
    p_ref: (8, C) f32 parameter block:
           row 0: reduction weights r (denominator folded in), tiled per segment
           row 1: weight, row 2: bias, row 3: embedding_c (only used if prescale),
           row 4: segment id per lane (as f32), rows 5-7: zero padding.

    r holds c/sum(c) (weighted), 1/emb_dim, or 1/numel, so per segment:
        mu  = sum(x * r)
        var = sum(x*x * r) - mu**2
        out = (x - mu) / (sqrt(var) + eps) * w + b
    which is algebraically identical to the PyTorch forward (eps added to sigma).
    """
    x = x_ref[...].astype(jnp.float32)
    r = p_ref[0:1, :]
    w = p_ref[1:2, :]
    b = p_ref[2:3, :]
    if prescale:                                  # unweighted branch: _input *= embedding_c
        x = x * p_ref[3:4, :]

    xr = x * r                                    # for sum(x * r)
    xxr = x * xr                                  # for sum(x^2 * r)  (independent reduce)

    if seg == 1:
        mu = jnp.sum(xr, axis=-1, keepdims=True)            # (T, 1)
        msq = jnp.sum(xxr, axis=-1, keepdims=True)          # (T, 1)
        var = jnp.maximum(msq - mu * mu, 0.0)
        # Exact per-row reciprocal (approx=True is ~bf16 accurate; would miss 1e-5).
        inv = pl.reciprocal(jnp.sqrt(var) + eps, approx=False)
        norm = (x - mu) * inv
    else:
        # Lane-dense packed layout: `seg` independent rows per lane-row.
        seg_id = p_ref[4:5, :]                    # (1, C) f32 segment ids, precomputed
        mu_b = jnp.zeros_like(x)
        inv_b = jnp.zeros_like(x)
        for g in range(seg):                      # static unroll, seg <= 16
            mask_g = seg_id == float(g)           # (1, C) bool
            mu_g = jnp.sum(jnp.where(mask_g, xr, 0.0), axis=-1, keepdims=True)
            msq_g = jnp.sum(jnp.where(mask_g, xxr, 0.0), axis=-1, keepdims=True)
            var_g = jnp.maximum(msq_g - mu_g * mu_g, 0.0)
            inv_g = pl.reciprocal(jnp.sqrt(var_g) + eps, approx=False)
            mu_b = jnp.where(mask_g, mu_g, mu_b)
            inv_b = jnp.where(mask_g, inv_g, inv_b)
        norm = (x - mu_b) * inv_b

    o_ref[...] = (norm * w + b).astype(o_ref.dtype)


def custom_layer_norm(x, weight, bias, *, eps=1e-5, embedding_c=None,
                      weighted=False, numel=None):
    """Pallas implementation of CustomLayerNorm.forward.

    x: (B, L, E);  weight/bias: (E,);  embedding_c: optional (E,).
    """
    B, L, E = x.shape
    if numel is None:
        numel = E                                  # np.product(normalized_shape), 1-D case
    rows = B * L
    has_c = embedding_c is not None
    prescale = (not weighted) and has_c            # PyTorch: `_input *= embedding_c`

    # Reduction weights with denominator folded in (no per-tile sum(c) or divide).
    if weighted and has_c:
        c32 = jnp.asarray(embedding_c, jnp.float32).reshape(E)
        r = c32 / jnp.sum(c32)
    elif weighted:
        r = jnp.full((E,), 1.0 / E, jnp.float32)
    else:
        r = jnp.full((E,), 1.0 / numel, jnp.float32)

    # ---- Lane-dense packing: G rows side-by-side along the 128-lane axis ----
    if E < 128 and 128 % E == 0:
        G = min(128 // E, 16)
    else:
        G = 1
        # TODO(synk): when 128 % E != 0 and E < 128 this keeps partial-width stores;
        # padding E with zero-weight lanes would need an extra full-tensor HBM copy.
    C = G * E

    # Pad a handful of rows (instead of dropping packing) when rows % G != 0.
    rows_pad = _round_up(rows, G)
    x2 = x.reshape(rows, E)
    if rows_pad != rows:
        x2 = jnp.pad(x2, ((0, rows_pad - rows), (0, 0)))
    rows_p = rows_pad // G
    x2 = x2.reshape(rows_p, C)                     # contiguous reshape: free

    # ---- Single (8, C) f32 parameter block: r / weight / bias / c / seg_id ----
    def tile_seg(v):
        return jnp.tile(jnp.asarray(v, jnp.float32).reshape(E), (G,))

    c_row = tile_seg(embedding_c) if prescale else jnp.ones((C,), jnp.float32)
    seg_ids = jnp.repeat(jnp.arange(G, dtype=jnp.float32), E)
    zeros_c = jnp.zeros((C,), jnp.float32)
    params = jnp.stack([tile_seg(r), tile_seg(weight), tile_seg(bias),
                        c_row, seg_ids, zeros_c, zeros_c, zeros_c])   # (8, C)

    # ---- Tile sizing: ~2 MiB per block, bounded by a corrected VMEM budget ----
    itemsize = jnp.dtype(x.dtype).itemsize
    vmem_cap = _vmem_capacity_bytes()
    # Double-buffered in + out blocks (2 bufs each); ~6 live f32 temporaries on the
    # current block only (single-buffered, compiler reuses liveness).
    bytes_per_row = C * (2 * 2 * itemsize + 6 * 4)
    vmem_budget = min(vmem_cap // 2, 48 << 20)     # leave most of VMEM for XLA fusions
    tile_by_vmem = max(8, ((vmem_budget // bytes_per_row) // 8) * 8)
    target_block_bytes = 2 << 20                   # measured >=85% HBM roofline here
    tile_by_block = max(8, ((target_block_bytes // (C * itemsize)) // 8) * 8)
    tile_cap = min(tile_by_vmem, tile_by_block)

    MIN_STEPS = 4                                  # never serialize on a grid of 1
    if rows_p <= 8:
        tile = rows_p                              # tiny input: single full-extent block
    else:
        tile = min(tile_cap, max(8, _round_up(_cdiv(rows_p, MIN_STEPS), 8)))
    grid_n = _cdiv(rows_p, tile)
    # Prefer an even step count so a 2-TensorCore (v7x) split gets balanced work.
    if grid_n > 1 and grid_n % 2 == 1:
        tile_alt = max(8, _round_up(_cdiv(rows_p, grid_n + 1), 8))
        if _cdiv(rows_p, tile_alt) % 2 == 0:
            tile = tile_alt
            grid_n = _cdiv(rows_p, tile)
    grid = (grid_n,)

    # vmem_limit from the actual requirement + a few MiB headroom (not 0.8*cap).
    block_bytes = tile * C * itemsize
    vmem_limit = int(2 * 2 * block_bytes + 6 * 4 * tile * C + 2 * 8 * C * 4 + (4 << 20))
    vmem_limit = max(8 << 20, min(vmem_limit, int(vmem_cap * 0.9)))

    kernel = functools.partial(_custom_ln_kernel, seg=G, eps=eps, prescale=prescale)

    row_spec = pl.BlockSpec((tile, C), lambda i: (i, 0))
    param_spec = pl.BlockSpec((8, C), lambda i: (0, 0))

    out2 = pl.pallas_call(
        kernel,
        out_shape=jax.ShapeDtypeStruct((rows_p, C), x.dtype),
        grid_spec=pltpu.PrefetchScalarGridSpec(
            num_scalar_prefetch=0,
            grid=grid,
            in_specs=[row_spec, param_spec],
            out_specs=pl.BlockSpec((tile, C), lambda i: (i, 0)),
        ),
        compiler_params=pltpu.CompilerParams(
            # TODO(synk): verify in a v7x trace that this shards across both
            # TensorCores; if not, switch the row axis to pltpu.CORE_PARALLEL.
            dimension_semantics=("parallel",),
            vmem_limit_bytes=vmem_limit,
        ),
    )(x2, params)

    out = out2.reshape(rows_pad, E)
    if rows_pad != rows:
        out = out[:rows]
    return out.reshape(B, L, E)


def _reference(x, weight, bias, *, eps=1e-5, embedding_c=None, weighted=False,
               numel=None):
    """Pure-JAX port of the PyTorch forward for verification."""
    B, L, E = x.shape
    if numel is None:
        numel = E
    x = x.astype(jnp.float32)
    if weighted:
        if embedding_c is not None:
            c = embedding_c.astype(jnp.float32)
            mu = (jnp.sum(x * c, -1) / jnp.sum(c))[..., None]
            s = jnp.sum((x - mu) ** 2 * c, -1)
            sigma = jnp.sqrt(s / jnp.sum(c))[..., None]
        else:
            mu = (jnp.sum(x, -1) / E)[..., None]
            s = jnp.sum((x - mu) ** 2, -1)
            sigma = jnp.sqrt(s / E)[..., None]
    else:
        if embedding_c is not None:
            x = x * embedding_c.astype(jnp.float32)
        mu = (jnp.sum(x, -1) / numel)[..., None]
        s = jnp.sum((x - mu) ** 2, -1) + (mu[..., 0] ** 2) * (numel - E)
        sigma = jnp.sqrt(s / numel)[..., None]
    norm = (x - mu) / (sigma + eps)
    return norm * weight + bias


if __name__ == "__main__":
    key = jax.random.PRNGKey(0)
    k_x, k_c, k_x2, k_x3 = jax.random.split(key, 4)

    B, L, E = 2, 8, 32                       # batch, layers, emb_dim (normalized_shape=(32,))
    x = jax.random.normal(k_x, (B, L, E), dtype=jnp.float32)

    # Deterministic parameters, matching reset_parameters():
    weight = jnp.ones((E,), dtype=jnp.float32)
    bias = jnp.zeros((E,), dtype=jnp.float32)
    eps = 1e-5

    # 1) default path: forward(x)  (weighted=False, embedding_c=None)
    out = custom_layer_norm(x, weight, bias, eps=eps)
    jax.block_until_ready(out)
    ref = _reference(x, weight, bias, eps=eps)
    assert out.shape == (B, L, E)
    assert jnp.allclose(out, ref, atol=2e-5, rtol=2e-5)

    emb_c = jax.nn.softplus(jax.random.normal(k_c, (E,), dtype=jnp.float32))

    # 2) weighted path: forward(x, embedding_c, weighted=True)
    out_w = custom_layer_norm(x, weight, bias, eps=eps, embedding_c=emb_c,
                              weighted=True)
    jax.block_until_ready(out_w)
    ref_w = _reference(x, weight, bias, eps=eps, embedding_c=emb_c, weighted=True)
    assert jnp.allclose(out_w, ref_w, atol=2e-5, rtol=2e-5)

    # 3) unweighted path with embedding_c prescale: forward(x, embedding_c)
    out_c = custom_layer_norm(x, weight, bias, eps=eps, embedding_c=emb_c,
                              weighted=False)
    jax.block_until_ready(out_c)
    ref_c = _reference(x, weight, bias, eps=eps, embedding_c=emb_c, weighted=False)
    assert jnp.allclose(out_c, ref_c, atol=2e-5, rtol=2e-5)

    # 4) rows not divisible by the packing factor -> exercises the row-padding path
    B3, L3 = 3, 5
    x3 = jax.random.normal(k_x3, (B3, L3, E), dtype=jnp.float32)
    out_p = custom_layer_norm(x3, weight, bias, eps=eps)
    jax.block_until_ready(out_p)
    ref_p = _reference(x3, weight, bias, eps=eps)
    assert jnp.allclose(out_p, ref_p, atol=2e-5, rtol=2e-5)

    # 5) wide embedding (seg == 1 path, multi-step pipelined grid)
    B2, L2, E2 = 2, 64, 256
    x2 = jax.random.normal(k_x2, (B2, L2, E2), dtype=jnp.float32)
    w2 = jnp.ones((E2,), dtype=jnp.float32)
    b2 = jnp.zeros((E2,), dtype=jnp.float32)
    out2 = custom_layer_norm(x2, w2, b2, eps=eps, weighted=True)
    jax.block_until_ready(out2)
    ref2 = _reference(x2, w2, b2, eps=eps, weighted=True)
    assert jnp.allclose(out2, ref2, atol=2e-5, rtol=2e-5)

    print("KERNEL_OK")
</pallas_src>

<mosaic_0001>
module attributes {stable_mosaic.version = 11 : i64} {
  func.func @_custom_ln_kernel(%arg0: i32, %arg1: memref<4x128xf32, #tpu.memory_space<vmem>>, %arg2: memref<8x128xf32, #tpu.memory_space<vmem>>, %arg3: memref<4x128xf32, #tpu.memory_space<vmem>>) attributes {dimension_semantics = [#tpu.dimension_semantics<parallel>], iteration_bounds = array<i64: 1>, scalar_prefetch = 0 : i64, scratch_operands = 0 : i64, tpu.core_type = #tpu.core_type<tc>, window_params = [{transform_indices = @transform_0, window_bounds = array<i64: 4, 128>}, {pipeline_mode = #tpu.pipeline_mode<synchronous>, transform_indices = @transform_1, window_bounds = array<i64: 8, 128>}, {transform_indices = @transform_2, window_bounds = array<i64: 4, 128>}]} {
    %c0 = arith.constant 0 : index
    %c0_0 = arith.constant 0 : index
    %0 = vector.load %arg1[%c0, %c0_0] : memref<4x128xf32, #tpu.memory_space<vmem>>, vector<4x128xf32>
    %c0_1 = arith.constant 0 : index
    %c0_2 = arith.constant 0 : index
    %1 = vector.load %arg2[%c0_1, %c0_2] : memref<8x128xf32, #tpu.memory_space<vmem>>, vector<1x128xf32>
    %c1 = arith.constant 1 : index
    %c0_3 = arith.constant 0 : index
    %2 = vector.load %arg2[%c1, %c0_3] : memref<8x128xf32, #tpu.memory_space<vmem>>, vector<1x128xf32>
    %c2 = arith.constant 2 : index
    %c0_4 = arith.constant 0 : index
    %3 = vector.load %arg2[%c2, %c0_4] : memref<8x128xf32, #tpu.memory_space<vmem>>, vector<1x128xf32>
    %4 = vector.broadcast %1 : vector<1x128xf32> to vector<4x128xf32>
    %5 = arith.mulf %0, %4 : vector<4x128xf32>
    %6 = arith.mulf %0, %5 : vector<4x128xf32>
    %c4 = arith.constant 4 : index
    %c0_5 = arith.constant 0 : index
    %7 = vector.load %arg2[%c4, %c0_5] : memref<8x128xf32, #tpu.memory_space<vmem>>, vector<1x128xf32>
    %cst = arith.constant 0.000000e+00 : f32
    %8 = vector.broadcast %cst : f32 to vector<4x128xf32>
    %cst_6 = arith.constant 0.000000e+00 : f32
    %9 = vector.broadcast %cst_6 : f32 to vector<4x128xf32>
    %cst_7 = arith.constant 0.000000e+00 : f32
    %10 = vector.broadcast %cst_7 : f32 to vector<1x128xf32>
    %11 = arith.cmpf oeq, %7, %10 : vector<1x128xf32>
    %cst_8 = arith.constant 0.000000e+00 : f32
    %12 = vector.shape_cast %11 : vector<1x128xi1> to vector<1x128xi1>
    %13 = vector.broadcast %12 : vector<1x128xi1> to vector<4x128xi1>
    %14 = vector.broadcast %cst_8 : f32 to vector<4x128xf32>
    %15 = arith.select %13, %5, %14 : vector<4x128xi1>, vector<4x128xf32>
    %cst_9 = arith.constant dense<0.000000e+00> : vector<4xf32>
    %16 = vector.multi_reduction <add>, %15, %cst_9 [1] : vector<4x128xf32> to vector<4xf32>
    %17 = vector.shape_cast %16 : vector<4xf32> to vector<4x1xf32>
    %cst_10 = arith.constant 0.000000e+00 : f32
    %18 = vector.shape_cast %11 : vector<1x128xi1> to vector<1x128xi1>
    %19 = vector.broadcast %18 : vector<1x128xi1> to vector<4x128xi1>
    %20 = vector.broadcast %cst_10 : f32 to vector<4x128xf32>
    %21 = arith.select %19, %6, %20 : vector<4x128xi1>, vector<4x128xf32>
    %cst_11 = arith.constant dense<0.000000e+00> : vector<4xf32>
    %22 = vector.multi_reduction <add>, %21, %cst_11 [1] : vector<4x128xf32> to vector<4xf32>
    %23 = vector.shape_cast %22 : vector<4xf32> to vector<4x1xf32>
    %24 = arith.mulf %17, %17 : vector<4x1xf32>
    %25 = arith.subf %23, %24 : vector<4x1xf32>
    %cst_12 = arith.constant 0.000000e+00 : f32
    %26 = vector.broadcast %cst_12 : f32 to vector<4x1xf32>
    %27 = arith.maximumf %25, %26 : vector<4x1xf32>
    %28 = math.sqrt %27 : vector<4x1xf32>
    %cst_13 = arith.constant 9.99999974E-6 : f32
    %29 = vector.broadcast %cst_13 : f32 to vector<4x1xf32>
    %30 = arith.addf %28, %29 : vector<4x1xf32>
    %31 = tpu.reciprocal %30 : vector<4x1xf32> -> vector<4x1xf32>
    %32 = vector.shape_cast %11 : vector<1x128xi1> to vector<1x128xi1>
    %33 = vector.broadcast %32 : vector<1x128xi1> to vector<4x128xi1>
    %34 = vector.shape_cast %17 : vector<4x1xf32> to vector<4x1xf32>
    %35 = vector.broadcast %34 : vector<4x1xf32> to vector<4x128xf32>
    %36 = arith.select %33, %35, %8 : vector<4x128xi1>, vector<4x128xf32>
    %37 = vector.shape_cast %11 : vector<1x128xi1> to vector<1x128xi1>
    %38 = vector.broadcast %37 : vector<1x128xi1> to vector<4x128xi1>
    %39 = vector.shape_cast %31 : vector<4x1xf32> to vector<4x1xf32>
    %40 = vector.broadcast %39 : vector<4x1xf32> to vector<4x128xf32>
    %41 = arith.select %38, %40, %9 : vector<4x128xi1>, vector<4x128xf32>
    %cst_14 = arith.constant 1.000000e+00 : f32
    %42 = vector.broadcast %cst_14 : f32 to vector<1x128xf32>
    %43 = arith.cmpf oeq, %7, %42 : vector<1x128xf32>
    %cst_15 = arith.constant 0.000000e+00 : f32
    %44 = vector.shape_cast %43 : vector<1x128xi1> to vector<1x128xi1>
    %45 = vector.broadcast %44 : vector<1x128xi1> to vector<4x128xi1>
    %46 = vector.broadcast %cst_15 : f32 to vector<4x128xf32>
    %47 = arith.select %45, %5, %46 : vector<4x128xi1>, vector<4x128xf32>
    %cst_16 = arith.constant dense<0.000000e+00> : vector<4xf32>
    %48 = vector.multi_reduction <add>, %47, %cst_16 [1] : vector<4x128xf32> to vector<4xf32>
    %49 = vector.shape_cast %48 : vector<4xf32> to vector<4x1xf32>
    %cst_17 = arith.constant 0.000000e+00 : f32
    %50 = vector.shape_cast %43 : vector<1x128xi1> to vector<1x128xi1>
    %51 = vector.broadcast %50 : vector<1x128xi1> to vector<4x128xi1>
    %52 = vector.broadcast %cst_17 : f32 to vector<4x128xf32>
    %53 = arith.select %51, %6, %52 : vector<4x128xi1>, vector<4x128xf32>
    %cst_18 = arith.constant dense<0.000000e+00> : vector<4xf32>
    %54 = vector.multi_reduction <add>, %53, %cst_18 [1] : vector<4x128xf32> to vector<4xf32>
    %55 = vector.shape_cast %54 : vector<4xf32> to vector<4x1xf32>
    %56 = arith.mulf %49, %49 : vector<4x1xf32>
    %57 = arith.subf %55, %56 : vector<4x1xf32>
    %cst_19 = arith.constant 0.000000e+00 : f32
    %58 = vector.broadcast %cst_19 : f32 to vector<4x1xf32>
    %59 = arith.maximumf %57, %58 : vector<4x1xf32>
    %60 = math.sqrt %59 : vector<4x1xf32>
    %cst_20 = arith.constant 9.99999974E-6 : f32
    %61 = vector.broadcast %cst_20 : f32 to vector<4x1xf32>
    %62 = arith.addf %60, %61 : vector<4x1xf32>
    %63 = tpu.reciprocal %62 : vector<4x1xf32> -> vector<4x1xf32>
    %64 = vector.shape_cast %43 : vector<1x128xi1> to vector<1x128xi1>
    %65 = vector.broadcast %64 : vector<1x128xi1> to vector<4x128xi1>
    %66 = vector.shape_cast %49 : vector<4x1xf32> to vector<4x1xf32>
    %67 = vector.broadcast %66 : vector<4x1xf32> to vector<4x128xf32>
    %68 = arith.select %65, %67, %36 : vector<4x128xi1>, vector<4x128xf32>
    %69 = vector.shape_cast %43 : vector<1x128xi1> to vector<1x128xi1>
    %70 = vector.broadcast %69 : vector<1x128xi1> to vector<4x128xi1>
    %71 = vector.shape_cast %63 : vector<4x1xf32> to vector<4x1xf32>
    %72 = vector.broadcast %71 : vector<4x1xf32> to vector<4x128xf32>
    %73 = arith.select %70, %72, %41 : vector<4x128xi1>, vector<4x128xf32>
    %cst_21 = arith.constant 2.000000e+00 : f32
    %74 = vector.broadcast %cst_21 : f32 to vector<1x128xf32>
    %75 = arith.cmpf oeq, %7, %74 : vector<1x128xf32>
    %cst_22 = arith.constant 0.000000e+00 : f32
    %76 = vector.shape_cast %75 : vector<1x128xi1> to vector<1x128xi1>
    %77 = vector.broadcast %76 : vector<1x128xi1> to vector<4x128xi1>
    %78 = vector.broadcast %cst_22 : f32 to vector<4x128xf32>
    %79 = arith.select %77, %5, %78 : vector<4x128xi1>, vector<4x128xf32>
    %cst_23 = arith.constant dense<0.000000e+00> : vector<4xf32>
    %80 = vector.multi_reduction <add>, %79, %cst_23 [1] : vector<4x128xf32> to vector<4xf32>
    %81 = vector.shape_cast %80 : vector<4xf32> to vector<4x1xf32>
    %cst_24 = arith.constant 0.000000e+00 : f32
    %82 = vector.shape_cast %75 : vector<1x128xi1> to vector<1x128xi1>
    %83 = vector.broadcast %82 : vector<1x128xi1> to vector<4x128xi1>
    %84 = vector.broadcast %cst_24 : f32 to vector<4x128xf32>
    %85 = arith.select %83, %6, %84 : vector<4x128xi1>, vector<4x128xf32>
    %cst_25 = arith.constant dense<0.000000e+00> : vector<4xf32>
    %86 = vector.multi_reduction <add>, %85, %cst_25 [1] : vector<4x128xf32> to vector<4xf32>
    %87 = vector.shape_cast %86 : vector<4xf32> to vector<4x1xf32>
    %88 = arith.mulf %81, %81 : vector<4x1xf32>
    %89 = arith.subf %87, %88 : vector<4x1xf32>
    %cst_26 = arith.constant 0.000000e+00 : f32
    %90 = vector.broadcast %cst_26 : f32 to vector<4x1xf32>
    %91 = arith.maximumf %89, %90 : vector<4x1xf32>
    %92 = math.sqrt %91 : vector<4x1xf32>
    %cst_27 = arith.constant 9.99999974E-6 : f32
    %93 = vector.broadcast %cst_27 : f32 to vector<4x1xf32>
    %94 = arith.addf %92, %93 : vector<4x1xf32>
    %95 = tpu.reciprocal %94 : vector<4x1xf32> -> vector<4x1xf32>
    %96 = vector.shape_cast %75 : vector<1x128xi1> to vector<1x128xi1>
    %97 = vector.broadcast %96 : vector<1x128xi1> to vector<4x128xi1>
    %98 = vector.shape_cast %81 : vector<4x1xf32> to vector<4x1xf32>
    %99 = vector.broadcast %98 : vector<4x1xf32> to vector<4x128xf32>
    %100 = arith.select %97, %99, %68 : vector<4x128xi1>, vector<4x128xf32>
    %101 = vector.shape_cast %75 : vector<1x128xi1> to vector<1x128xi1>
    %102 = vector.broadcast %101 : vector<1x128xi1> to vector<4x128xi1>
    %103 = vector.shape_cast %95 : vector<4x1xf32> to vector<4x1xf32>
    %104 = vector.broadcast %103 : vector<4x1xf32> to vector<4x128xf32>
    %105 = arith.select %102, %104, %73 : vector<4x128xi1>, vector<4x128xf32>
    %cst_28 = arith.constant 3.000000e+00 : f32
    %106 = vector.broadcast %cst_28 : f32 to vector<1x128xf32>
    %107 = arith.cmpf oeq, %7, %106 : vector<1x128xf32>
    %cst_29 = arith.constant 0.000000e+00 : f32
    %108 = vector.shape_cast %107 : vector<1x128xi1> to vector<1x128xi1>
    %109 = vector.broadcast %108 : vector<1x128xi1> to vector<4x128xi1>
    %110 = vector.broadcast %cst_29 : f32 to vector<4x128xf32>
    %111 = arith.select %109, %5, %110 : vector<4x128xi1>, vector<4x128xf32>
    %cst_30 = arith.constant dense<0.000000e+00> : vector<4xf32>
    %112 = vector.multi_reduction <add>, %111, %cst_30 [1] : vector<4x128xf32> to vector<4xf32>
    %113 = vector.shape_cast %112 : vector<4xf32> to vector<4x1xf32>
    %cst_31 = arith.constant 0.000000e+00 : f32
    %114 = vector.shape_cast %107 : vector<1x128xi1> to vector<1x128xi1>
    %115 = vector.broadcast %114 : vector<1x128xi1> to vector<4x128xi1>
    %116 = vector.broadcast %cst_31 : f32 to vector<4x128xf32>
    %117 = arith.select %115, %6, %116 : vector<4x128xi1>, vector<4x128xf32>
    %cst_32 = arith.constant dense<0.000000e+00> : vector<4xf32>
    %118 = vector.multi_reduction <add>, %117, %cst_32 [1] : vector<4x128xf32> to vector<4xf32>
    %119 = vector.shape_cast %118 : vector<4xf32> to vector<4x1xf32>
    %120 = arith.mulf %113, %113 : vector<4x1xf32>
    %121 = arith.subf %119, %120 : vector<4x1xf32>
    %cst_33 = arith.constant 0.000000e+00 : f32
    %122 = vector.broadcast %cst_33 : f32 to vector<4x1xf32>
    %123 = arith.maximumf %121, %122 : vector<4x1xf32>
    %124 = math.sqrt %123 : vector<4x1xf32>
    %cst_34 = arith.constant 9.99999974E-6 : f32
    %125 = vector.broadcast %cst_34 : f32 to vector<4x1xf32>
    %126 = arith.addf %124, %125 : vector<4x1xf32>
    %127 = tpu.reciprocal %126 : vector<4x1xf32> -> vector<4x1xf32>
    %128 = vector.shape_cast %107 : vector<1x128xi1> to vector<1x128xi1>
    %129 = vector.broadcast %128 : vector<1x128xi1> to vector<4x128xi1>
    %130 = vector.shape_cast %113 : vector<4x1xf32> to vector<4x1xf32>
    %131 = vector.broadcast %130 : vector<4x1xf32> to vector<4x128xf32>
    %132 = arith.select %129, %131, %100 : vector<4x128xi1>, vector<4x128xf32>
    %133 = vector.shape_cast %107 : vector<1x128xi1> to vector<1x128xi1>
    %134 = vector.broadcast %133 : vector<1x128xi1> to vector<4x128xi1>
    %135 = vector.shape_cast %127 : vector<4x1xf32> to vector<4x1xf32>
    %136 = vector.broadcast %135 : vector<4x1xf32> to vector<4x128xf32>
    %137 = arith.select %134, %136, %105 : vector<4x128xi1>, vector<4x128xf32>
    %138 = arith.subf %0, %132 : vector<4x128xf32>
    %139 = arith.mulf %138, %137 : vector<4x128xf32>
    %140 = vector.broadcast %2 : vector<1x128xf32> to vector<4x128xf32>
    %141 = arith.mulf %139, %140 : vector<4x128xf32>
    %142 = vector.broadcast %3 : vector<1x128xf32> to vector<4x128xf32>
    %143 = arith.addf %141, %142 : vector<4x128xf32>
    %c0_35 = arith.constant 0 : index
    %c0_36 = arith.constant 0 : index
    %144 = vector.load %arg3[%c0_35, %c0_36] : memref<4x128xf32, #tpu.memory_space<vmem>>, vector<4x128xf32>
    tpu.vector_store %arg3[%c0_35, %c0_36], %143 {strides = array<i32>} : memref<4x128xf32, #tpu.memory_space<vmem>>, vector<4x128xf32>,
    return
  }
  func.func @transform_0(%arg0: i32) -> (i32, i32) {
    %c0_i32 = arith.constant 0 : i32
    %c0_i32_0 = arith.constant 0 : i32
    return %arg0, %c0_i32 : i32, i32
  }
  func.func @transform_1(%arg0: i32) -> (i32, i32) {
    %c0_i32 = arith.constant 0 : i32
    %c0_i32_0 = arith.constant 0 : i32
    %c0_i32_1 = arith.constant 0 : i32
    return %c0_i32, %c0_i32_0 : i32, i32
  }
  func.func @transform_2(%arg0: i32) -> (i32, i32) {
    %c0_i32 = arith.constant 0 : i32
    %c0_i32_0 = arith.constant 0 : i32
    return %arg0, %c0_i32 : i32, i32
  }
}

</mosaic_0001>

<llo_original>
// kernel: tpu_custom_call.1
$region0: #{tpu_custom_call.1}
  #allocation0 [shape = 'u32[]', space=smem, size = 0x4, offset = 0x4, fixed_abs, tag = 'smem constant byte address 0x4 - core index']
  #allocation1 [shape = 'u32[72,128]{1,0:T(1,128)}', space=vmem, size = 0x9000, scoped, tag = 'internal scratch']
  %s0 = inlined_call_operand.hbm [shape: f32[4,128], index: 0, kind: input, shape index: {}]
  %s1 = inlined_call_operand.hbm [shape: f32[8,128], index: 1, kind: input, shape index: {}]
  %s2 = inlined_call_operand.hbm [shape: f32[4,128], index: 2, kind: output, shape index: {}]
  %s3 = sld [smem:[#allocation0]]
  $region26: #{tpu_custom_call.1} parent=0
    _
  %s5 = ssub.s32 1, %s3
  %s6 = scalar_select 0, %s5, %s3
  $region1: #{tpu_custom_call.1} parent=0
    #allocation2 [shape = 'u8[2048]{0}', space=vmem, size = 0x800, scoped, tag = 'input window, operand 0, single buffered']
    #allocation3 [shape = 's32[1]{0}', space=sflag, size = 0x4, scoped, tag = 'scoped memory for tpu_custom_call.1']
    #allocation4 [shape = 's32[1]{0}', space=sflag, size = 0x4, scoped, tag = 'scoped memory for tpu_custom_call.1']
    #allocation5 [shape = 'u8[4096]{0}', space=vmem, size = 0x1000, scoped, tag = 'input window, operand 1, single buffered']
    #allocation6 [shape = 's32[1]{0}', space=sflag, size = 0x4, scoped, tag = 'scoped memory for tpu_custom_call.1']
    #allocation7 [shape = 'u8[2048]{0}', space=vmem, size = 0x800, scoped, tag = 'output window, operand 0, single buffered']
    %7 = vsyncpa [#allocation3], 0
    %8 = vsyncpa [#allocation6], 0
    %9 = vsyncpa [#allocation4], 0
    // Predicated region
    $region2: #{tpu_custom_call.1} parent=1 // pred_check
      _
    $region3: #{tpu_custom_call.1} parent=1 // pred_check_branch
      %11 = sbr.rel (0) target = $region5
    $region4: #{tpu_custom_call.1} parent=1 // pred_region
      %13 = vsyncadd [#allocation3], 0
      %s15 = sshll.u32 %s0, 4
      %s16 = int_to_ptr.hbm [resolvable:$true] %s15
      %s17 = sshll.u32 [#allocation2], 4
      %s18 = int_to_ptr.vmem [resolvable:$true] %s17
      %20 = dma.hbm_to_vmem [thread:$0]  %s16, 64, %s18, [#allocation3]
    $region5: #{tpu_custom_call.1} parent=1 // pred_fallthru
      _
    // Predicated region
    $region6: #{tpu_custom_call.1} parent=1 // pred_check
      _
    $region7: #{tpu_custom_call.1} parent=1 // pred_check_branch
      %22 = sbr.rel (0) target = $region9
    $region8: #{tpu_custom_call.1} parent=1 // pred_region
      %24 = vsyncadd [#allocation6], 0
      %s26 = sshll.u32 %s1, 4
      %s27 = int_to_ptr.hbm [resolvable:$true] %s26
      %s28 = sshll.u32 [#allocation5], 4
      %s29 = int_to_ptr.vmem [resolvable:$true] %s28
      %31 = dma.hbm_to_vmem [thread:$0]  %s27, 128, %s29, [#allocation6]
    $region9: #{tpu_custom_call.1} parent=1 // pred_fallthru
      _
    // Predicated region
    $region10: #{tpu_custom_call.1} parent=1 // pred_check
      _
    $region11: #{tpu_custom_call.1} parent=1 // pred_check_branch
      %33 = sbr.rel (0) target = $region13
    $region12: #{tpu_custom_call.1} parent=1 // pred_region
      %35 = dma.done [#allocation3], 64
    $region13: #{tpu_custom_call.1} parent=1 // pred_fallthru
      _
    // Predicated region
    $region14: #{tpu_custom_call.1} parent=1 // pred_check
      _
    $region15: #{tpu_custom_call.1} parent=1 // pred_check_branch
      %37 = sbr.rel (0) target = $region17
    $region16: #{tpu_custom_call.1} parent=1 // pred_region
      %39 = dma.done [#allocation6], 128
    $region17: #{tpu_custom_call.1} parent=1 // pred_fallthru
      _
    %v40 = vld [vmem:[#allocation2] sm:$0xf]
    %v41 = vld [vmem:[#allocation5] sm:$0x1]
    %v42 = vld [vmem:[#allocation5 + $0x1] sm:$0x1]
    %v43 = vld [vmem:[#allocation5 + $0x2] sm:$0x1]
    %v44 = vperm.slane %v41, 0
    %v45 = vmul.f32 %v40, %v44
    %v46 = vmul.f32 %v40, %v45
    %v47 = vld [vmem:[#allocation5 + $0x4] sm:$0x1]
    %vm48 = vcmp.eq.f32.partialorder %v47, 0.0
    %v49 = vsel %vm48, 1, 0
    %v50 = vperm.slane %v49, 0
    %vm51 = vcmp.eq.s32.totalorder %v50, 1
    %v52 = vsel %vm51, %v45, 0.0
    %vm53 = vcmask 1043456
    %v54 = vsel %vm53, %v52, 0.0
    %55 = vadd.xlane.f32.xlu0 %v54
    %v56 = vpop.xlane.xlu0 %55
    %v57 = vsel %vm51, %v46, 0.0
    %v58 = vsel %vm53, %v57, 0.0
    %59 = vadd.xlane.f32.xlu0 %v58
    %v60 = vpop.xlane.xlu0 %59
    %v61 = vmul.f32 %v56, %v56
    %v62 = vsub.f32 %v60, %v61
    %v63 = vmax.f32 %v62, 0.0
    %v64 = vrsqrt.pop %v63
    %v65 = vmul.f32 %v64, %v63
    %v66 = vmul.f32 %v65, %v64
    %v67 = vmul.f32 0.5, %v66
    %v68 = vsub.f32 1.5, %v67
    %v69 = vmul.f32 %v64, %v68
    %v70 = vmul.f32 %v63, %v69
    %vm71 = vcmp.eq.f32.partialorder %v63, inf
    %v72 = vsel %vm71, %v63, %v70
    %vm73 = vcmp.eq.f32.partialorder %v63, 0.0
    %v74 = vand.u32 %v63, 2147483648
    %v75 = vsel %vm73, %v74, %v72
    %v76 = vadd.f32 %v75, 1e-05
    %v77 = vrcp.pop %v76
    %v78 = vmul.f32 %v76, %v77
    %v79 = vsub.f32 1.0, %v78
    %v80 = vmul.f32 %v77, %v79
    %v81 = vadd.f32 %v77, %v80
    %vm82 = vweird.f32 %v76
    %vm83 = vweird.f32 %v77
    %vm84 = vmor %vm82, %vm83
    %v85 = vsel %vm84, %v77, %v81
    %v86 = vand.u32 2147483647, %v76
    %vm87 = vcmp.eq.f32.partialorder %v86, 8.507059e+37
    %v88 = vand.u32 %v76, 2147483648
    %v89 = vor.u32 1.1754944e-38, %v88
    %v90 = vsel %vm87, %v89, %v85
    %v91 = vsel %vm51, %v56, 0.0
    %v92 = vsel %vm51, %v90, 0.0
    %vm93 = vcmp.eq.f32.partialorder %v47, 1.0
    %v94 = vsel %vm93, 1, 0
    %v95 = vperm.slane %v94, 0
    %vm96 = vcmp.eq.s32.totalorder %v95, 1
    %v97 = vsel %vm96, %v45, 0.0
    %v98 = vsel %vm53, %v97, 0.0
    %99 = vadd.xlane.f32.xlu0 %v98
    %v100 = vpop.xlane.xlu0 %99
    %v101 = vsel %vm96, %v46, 0.0
    %v102 = vsel %vm53, %v101, 0.0
    %103 = vadd.xlane.f32.xlu0 %v102
    %v104 = vpop.xlane.xlu0 %103
    %v105 = vmul.f32 %v100, %v100
    %v106 = vsub.f32 %v104, %v105
    %v107 = vmax.f32 %v106, 0.0
    %v108 = vrsqrt.pop %v107
    %v109 = vmul.f32 %v108, %v107
    %v110 = vmul.f32 %v109, %v108
    %v111 = vmul.f32 0.5, %v110
    %v112 = vsub.f32 1.5, %v111
    %v113 = vmul.f32 %v108, %v112
    %v114 = vmul.f32 %v107, %v113
    %vm115 = vcmp.eq.f32.partialorder %v107, inf
    %v116 = vsel %vm115, %v107, %v114
    %vm117 = vcmp.eq.f32.partialorder %v107, 0.0
    %v118 = vand.u32 %v107, 2147483648
    %v119 = vsel %vm117, %v118, %v116
    %v120 = vadd.f32 %v119, 1e-05
    %v121 = vrcp.pop %v120
    %v122 = vmul.f32 %v120, %v121
    %v123 = vsub.f32 1.0, %v122
    %v124 = vmul.f32 %v121, %v123
    %v125 = vadd.f32 %v121, %v124
    %vm126 = vweird.f32 %v120
    %vm127 = vweird.f32 %v121
    %vm128 = vmor %vm126, %vm127
    %v129 = vsel %vm128, %v121, %v125
    %v130 = vand.u32 2147483647, %v120
    %vm131 = vcmp.eq.f32.partialorder %v130, 8.507059e+37
    %v132 = vand.u32 %v120, 2147483648
    %v133 = vor.u32 1.1754944e-38, %v132
    %v134 = vsel %vm131, %v133, %v129
    %v135 = vsel %vm96, %v100, %v91
    %v136 = vsel %vm96, %v134, %v92
    %vm137 = vcmp.eq.f32.partialorder %v47, 2.0
    %v138 = vsel %vm137, 1, 0
    %v139 = vperm.slane %v138, 0
    %vm140 = vcmp.eq.s32.totalorder %v139, 1
    %v141 = vsel %vm140, %v45, 0.0
    %v142 = vsel %vm53, %v141, 0.0
    %143 = vadd.xlane.f32.xlu0 %v142
    %v144 = vpop.xlane.xlu0 %143
    %v145 = vsel %vm140, %v46, 0.0
    %v146 = vsel %vm53, %v145, 0.0
    %147 = vadd.xlane.f32.xlu0 %v146
    %v148 = vpop.xlane.xlu0 %147
    %v149 = vmul.f32 %v144, %v144
    %v150 = vsub.f32 %v148, %v149
    %v151 = vmax.f32 %v150, 0.0
    %v152 = vrsqrt.pop %v151
    %v153 = vmul.f32 %v152, %v151
    %v154 = vmul.f32 %v153, %v152
    %v155 = vmul.f32 0.5, %v154
    %v156 = vsub.f32 1.5, %v155
    %v157 = vmul.f32 %v152, %v156
    %v158 = vmul.f32 %v151, %v157
    %vm159 = vcmp.eq.f32.partialorder %v151, inf
    %v160 = vsel %vm159, %v151, %v158
    %vm161 = vcmp.eq.f32.partialorder %v151, 0.0
    %v162 = vand.u32 %v151, 2147483648
    %v163 = vsel %vm161, %v162, %v160
    %v164 = vadd.f32 %v163, 1e-05
    %v165 = vrcp.pop %v164
    %v166 = vmul.f32 %v164, %v165
    %v167 = vsub.f32 1.0, %v166
    %v168 = vmul.f32 %v165, %v167
    %v169 = vadd.f32 %v165, %v168
    %vm170 = vweird.f32 %v164
    %vm171 = vweird.f32 %v165
    %vm172 = vmor %vm170, %vm171
    %v173 = vsel %vm172, %v165, %v169
    %v174 = vand.u32 2147483647, %v164
    %vm175 = vcmp.eq.f32.partialorder %v174, 8.507059e+37
    %v176 = vand.u32 %v164, 2147483648
    %v177 = vor.u32 1.1754944e-38, %v176
    %v178 = vsel %vm175, %v177, %v173
    %v179 = vsel %vm140, %v144, %v135
    %v180 = vsel %vm140, %v178, %v136
    %vm181 = vcmp.eq.f32.partialorder %v47, 3.0
    %v182 = vsel %vm181, 1, 0
    %v183 = vperm.slane %v182, 0
    %vm184 = vcmp.eq.s32.totalorder %v183, 1
    %v185 = vsel %vm184, %v45, 0.0
    %v186 = vsel %vm53, %v185, 0.0
    %187 = vadd.xlane.f32.xlu0 %v186
    %v188 = vpop.xlane.xlu0 %187
    %v189 = vsel %vm184, %v46, 0.0
    %v190 = vsel %vm53, %v189, 0.0
    %191 = vadd.xlane.f32.xlu0 %v190
    %v192 = vpop.xlane.xlu0 %191
    %v193 = vmul.f32 %v188, %v188
    %v194 = vsub.f32 %v192, %v193
    %v195 = vmax.f32 %v194, 0.0
    %v196 = vrsqrt.pop %v195
    %v197 = vmul.f32 %v196, %v195
    %v198 = vmul.f32 %v197, %v196
    %v199 = vmul.f32 0.5, %v198
    %v200 = vsub.f32 1.5, %v199
    %v201 = vmul.f32 %v196, %v200
    %v202 = vmul.f32 %v195, %v201
    %vm203 = vcmp.eq.f32.partialorder %v195, inf
    %v204 = vsel %vm203, %v195, %v202
    %vm205 = vcmp.eq.f32.partialorder %v195, 0.0
    %v206 = vand.u32 %v195, 2147483648
    %v207 = vsel %vm205, %v206, %v204
    %v208 = vadd.f32 %v207, 1e-05
    %v209 = vrcp.pop %v208
    %v210 = vmul.f32 %v208, %v209
    %v211 = vsub.f32 1.0, %v210
    %v212 = vmul.f32 %v209, %v211
    %v213 = vadd.f32 %v209, %v212
    %vm214 = vweird.f32 %v208
    %vm215 = vweird.f32 %v209
    %vm216 = vmor %vm214, %vm215
    %v217 = vsel %vm216, %v209, %v213
    %v218 = vand.u32 2147483647, %v208
    %vm219 = vcmp.eq.f32.partialorder %v218, 8.507059e+37
    %v220 = vand.u32 %v208, 2147483648
    %v221 = vor.u32 1.1754944e-38, %v220
    %v222 = vsel %vm219, %v221, %v217
    %v223 = vsel %vm184, %v188, %v179
    %v224 = vsel %vm184, %v222, %v180
    %v225 = vsub.f32 %v40, %v223
    %v226 = vmul.f32 %v225, %v224
    %v227 = vperm.slane %v42, 0
    %v228 = vmul.f32 %v226, %v227
    %v229 = vperm.slane %v43, 0
    %v230 = vadd.f32 %v228, %v229
    %231 = vst [vmem:[#allocation7] sm:$0xf] %v230
    // Predicated region
    $region18: #{tpu_custom_call.1} parent=1 // pred_check
      _
    $region19: #{tpu_custom_call.1} parent=1 // pred_check_branch
      %233 = sbr.rel (0) target = $region21
    $region20: #{tpu_custom_call.1} parent=1 // pred_region
      %235 = vsyncadd [#allocation4], 0
      %s237 = sshll.u32 [#allocation7], 4
      %s238 = int_to_ptr.vmem [resolvable:$true] %s237
      %s239 = sshll.u32 %s2, 4
      %s240 = int_to_ptr.hbm [resolvable:$true] %s239
      %242 = dma.vmem_to_hbm [thread:$0]  %s238, 64, %s240, [#allocation4]
    $region21: #{tpu_custom_call.1} parent=1 // pred_fallthru
      _
    // Predicated region
    $region22: #{tpu_custom_call.1} parent=1 // pred_check
      _
    $region23: #{tpu_custom_call.1} parent=1 // pred_check_branch
      %244 = sbr.rel (0) target = $region25
    $region24: #{tpu_custom_call.1} parent=1 // pred_region
      %246 = dma.done [#allocation4], 64
    $region25: #{tpu_custom_call.1} parent=1 // pred_fallthru
      _
    %247 = vsyncpa [#allocation3], 1
    %248 = vsyncpa [#allocation6], 1
    %249 = vsyncpa [#allocation4], 1

</llo_original>
